<compile_context>
chip_gen: v7x
topology: tpu7x:2x2x1
jax: 0.10.0
libtpu: 0.0.40
codegen_flags: <defaults>
</compile_context>

<pallas_src>
import functools

import numpy as np

import jax
import jax.numpy as jnp
from jax.experimental import pallas as pl
from jax.experimental.pallas import tpu as pltpu


# ----------------------------- helpers --------------------------------------

def _round_up(v: int, m: int) -> int:
    return ((v + m - 1) // m) * m


def _cdiv(a: int, b: int) -> int:
    return (a + b - 1) // b


_FAST_PATH_BYTES = 10 * 1024 * 1024       # single-block path for problems <= this
_RESIDENT_W_BUDGET = 44 * 1024 * 1024     # keep W resident in VMEM if estimate fits
_VMEM_LIMIT_CAP = 56 * 1024 * 1024        # never request more scoped VMEM than this


# ----------------------------- kernels ---------------------------------------

def _linear_kernel_small(x_ref, w_ref, b_ref, o_ref):
    """Single-shot kernel: whole problem resident in VMEM, no grid machinery."""
    x = x_ref[...]
    if x.dtype != w_ref.dtype:          # cast activations for the MXU (bf16 x bf16 -> f32)
        x = x.astype(w_ref.dtype)
    o_ref[...] = (
        jnp.dot(x, w_ref[...], preferred_element_type=jnp.float32) + b_ref[...]
    )


def _linear_kernel_tiled(x_ref, w_ref, b_ref, o_ref, *, k_valid, tk, mask_k,
                         resident_w):
    """grid = (M_tiles, K_tiles); K (reduction) is the trailing "arbitrary" axis.

    The output block index is constant across k, so o_ref stays resident in
    VMEM and doubles as the f32 accumulator (no scratch buffer needed).
    """
    k = pl.program_id(1)

    @pl.when(k == 0)
    def _():
        o_ref[...] = jnp.zeros_like(o_ref)

    x = x_ref[...]
    if x.dtype != w_ref.dtype:          # in-kernel cast keeps the X HBM stream copy-free
        x = x.astype(w_ref.dtype)
    if mask_k:
        # The last k-tile of X is a partial edge block (K not a multiple of tk):
        # out-of-bounds lanes are unspecified (possibly NaN/Inf), so zero them
        # explicitly before they reach the MXU.  W is zero-padded to Kpp at
        # prep time, so (masked-0 X) x (0 W) contributes exactly 0.
        col = jax.lax.broadcasted_iota(jnp.int32, x.shape, 1) + k * tk
        x = jnp.where(col < k_valid, x, jnp.zeros_like(x))

    if resident_w:
        # W was DMA'd once (constant index map); slice the current K window.
        off = pl.multiple_of(k * tk, 128)
        w = w_ref[pl.ds(off, tk), :]
    else:
        w = w_ref[...]

    o_ref[...] += jnp.dot(x, w, preferred_element_type=jnp.float32)

    @pl.when(k == pl.num_programs(1) - 1)
    def _():
        o_ref[...] += b_ref[...]        # bias epilogue on the last reduction step


# ----------------------------- weight prep (hoisted) -------------------------

def prepare_forecasting_head_params(weight, bias, *, param_dtype=jnp.bfloat16,
                                    max_tk=None):
    """One-time weight preparation (call at model init, NOT per forward).

    weight : [horizon, head_nf]  (PyTorch nn.Linear layout)
    bias   : [horizon]

    Produces the transposed, K/N-padded, `param_dtype`-cast weight so the hot
    path never re-transposes / re-pads / re-casts the K x N tensor.
    """
    weight = jnp.asarray(weight)
    bias = jnp.asarray(bias)
    horizon, head_nf = weight.shape
    assert bias.shape == (horizon,)

    param_dtype = np.dtype(param_dtype)
    if max_tk is None:
        # Fixed large K tile: 2048 for 16-bit weight streams, 1024 for f32.
        max_tk = 2048 if param_dtype.itemsize <= 2 else 1024

    np_ = _round_up(max(horizon, 1), 128)          # lane-dense output width
    tk = min(max_tk, _round_up(head_nf, 128))      # multiple of 128
    kpp = _round_up(head_nf, tk)                   # W padded so K tiles are never partial

    w_t = jnp.transpose(weight).astype(jnp.float32)                      # [K, N]
    w_p = jnp.pad(w_t, ((0, kpp - head_nf), (0, np_ - horizon))).astype(param_dtype)
    b_p = jnp.pad(bias.astype(jnp.float32), (0, np_ - horizon)).reshape(1, np_)

    return {
        "w": w_p,            # [Kpp, Np]  param_dtype, zero padded
        "b": b_p,            # [1, Np]    f32
        "head_nf": head_nf,
        "horizon": horizon,
        "tk": tk,
        "kpp": kpp,
        "np": np_,
    }


# ----------------------------- hot path --------------------------------------

def _linear_2d(params, x2d, *, tm=512, force_tiled=False):
    """y[M, Np] = x2d[M, K] @ W[Kpp, Np] + b via Pallas (f32 output, padded N)."""
    M, K = x2d.shape
    assert K == params["head_nf"]
    w_p, b_p = params["w"], params["b"]
    kpp, np_, tk = params["kpp"], params["np"], params["tk"]

    x_isz = x2d.dtype.itemsize
    w_isz = w_p.dtype.itemsize

    # ---- small-problem fast path: one block, no grid / pipeline overhead ----
    fast_bytes = M * kpp * x_isz + kpp * np_ * w_isz + M * np_ * 4 + np_ * 4
    if (not force_tiled) and fast_bytes <= _FAST_PATH_BYTES:
        xp = x2d if K == kpp else jnp.pad(x2d, ((0, 0), (0, kpp - K)))
        return pl.pallas_call(
            _linear_kernel_small,
            out_shape=jax.ShapeDtypeStruct((M, np_), jnp.float32),
            compiler_params=pltpu.CompilerParams(
                vmem_limit_bytes=32 * 1024 * 1024),
        )(xp, w_p, b_p)

    # ---- tiled / pipelined path ----------------------------------------------
    nk = kpp // tk                      # exact: W is padded to a tk multiple
    mask_k = (K % tk) != 0              # last X k-tile is a partial edge block
    tm_eff = min(tm, _round_up(M, 8))

    def _vmem_est(resident):
        w_bytes = (kpp if resident else tk) * np_ * w_isz
        return (2 * tm_eff * tk * x_isz     # double-buffered X tiles
                + 2 * w_bytes               # W (conservatively 2 buffers)
                + 2 * tm_eff * np_ * 4      # resident f32 output block
                + 2 * np_ * 4)              # bias

    # Keep W resident in VMEM (DMA'd once, not re-streamed per M tile) when it
    # fits a budget sized against v7x's 64 MiB/TC physical VMEM.
    resident_w = _vmem_est(True) <= _RESIDENT_W_BUDGET

    # v7x megacore: give the "parallel" M axis >= 2 programs when that costs
    # no extra W traffic (W resident).  Near-free on single-TC v5e/v6e.
    if resident_w and M >= 16 and _cdiv(M, tm_eff) == 1:
        tm_eff = _round_up(_cdiv(M, 2), 8)

    grid = (_cdiv(M, tm_eff), nk)

    if resident_w:
        w_spec = pl.BlockSpec((kpp, np_), lambda i, k: (0, 0))   # loaded once
    else:
        w_spec = pl.BlockSpec((tk, np_), lambda i, k: (k, 0))    # streamed per k

    kernel = functools.partial(
        _linear_kernel_tiled, k_valid=K, tk=tk, mask_k=mask_k,
        resident_w=resident_w)

    vmem_limit = int(min(max(_vmem_est(resident_w) + 4 * 1024 * 1024,
                             32 * 1024 * 1024),
                         _VMEM_LIMIT_CAP))

    return pl.pallas_call(
        kernel,
        out_shape=jax.ShapeDtypeStruct((M, np_), jnp.float32),
        grid_spec=pltpu.PrefetchScalarGridSpec(
            num_scalar_prefetch=0,
            grid=grid,
            in_specs=[
                # X streams straight from HBM: no wrapper-side pad/cast copy.
                # (If a profile ever shows exposed X DMA, add
                #  pipeline_mode=pl.Buffered(3) here.)
                pl.BlockSpec((tm_eff, tk), lambda i, k: (i, k)),
                w_spec,
                pl.BlockSpec((1, np_), lambda i, k: (0, 0)),
            ],
            out_specs=pl.BlockSpec((tm_eff, np_), lambda i, k: (i, 0)),
        ),
        compiler_params=pltpu.CompilerParams(
            # M rows independent -> parallel (shards across v7x's 2 TCs);
            # K is the reduction (output block revisited) -> arbitrary.
            dimension_semantics=("parallel", "arbitrary"),
            vmem_limit_bytes=vmem_limit,
        ),
    )(x2d, w_p, b_p)


def forecasting_head_apply(params, x, input_mask=None, *, tm=512,
                           force_tiled=False):
    """ForecastingHead forward with pre-prepared params.

    x : [batch, n_channels, n_patches, d_model]
    returns [batch, n_channels, horizon] in x.dtype.
    `input_mask` is accepted (as in the PyTorch forward) but unused.
    """
    del input_mask
    b, c, p, d = x.shape
    head_nf = p * d
    assert head_nf == params["head_nf"]
    horizon = params["horizon"]

    # nn.Flatten(start_dim=-2) is a row-major reshape over (n_patches, d_model).
    x2d = x.reshape(b * c, head_nf)
    y2d = _linear_2d(params, x2d, tm=tm, force_tiled=force_tiled)
    # Dropout(p=0) / eval mode is the identity — nothing to do.
    return y2d[:, :horizon].reshape(b, c, horizon).astype(x.dtype)


def forecasting_head(x, weight, bias, *, param_dtype=jnp.bfloat16, tm=512,
                     force_tiled=False):
    """Convenience one-shot API.  In real use, hoist prepare_...() to init."""
    params = prepare_forecasting_head_params(weight, bias, param_dtype=param_dtype)
    return forecasting_head_apply(params, x, tm=tm, force_tiled=force_tiled)


# ----------------------------- self-test -------------------------------------

if __name__ == "__main__":
    key = jax.random.PRNGKey(0)

    def run_case(seed, batch, n_channels, n_patches, d_model, horizon, *,
                 param_dtype, force_tiled, atol, rtol):
        head_nf = n_patches * d_model
        kx, kw, kb = jax.random.split(jax.random.fold_in(key, seed), 3)
        x = jax.random.normal(kx, (batch, n_channels, n_patches, d_model),
                              jnp.float32)
        weight = jax.random.normal(kw, (horizon, head_nf), jnp.float32) * 0.02
        bias = jax.random.normal(kb, (horizon,), jnp.float32) * 0.02

        # One-time (init-time) weight prep, hoisted out of the forward.
        params = prepare_forecasting_head_params(weight, bias,
                                                 param_dtype=param_dtype)
        y = forecasting_head_apply(params, x, force_tiled=force_tiled)
        y = jax.block_until_ready(y)

        ref = (np.asarray(x, np.float64).reshape(batch * n_channels, head_nf)
               @ np.asarray(weight, np.float64).T
               + np.asarray(bias, np.float64)).reshape(batch, n_channels, horizon)
        assert y.shape == ref.shape, (y.shape, ref.shape)
        err = np.abs(np.asarray(y, np.float64) - ref).max()
        assert np.allclose(np.asarray(y, np.float64), ref, atol=atol, rtol=rtol), \
            f"mismatch (seed={seed}, max abs err {err})"

    # 1) Small module-consistent shapes, f32 weights -> single-block fast path.
    run_case(0, 2, 4, 8, 32, 96,
             param_dtype=jnp.float32, force_tiled=False, atol=5e-3, rtol=5e-3)
    # 2) Tiled path, default bf16 weight streaming, K == tk (resident W).
    run_case(1, 2, 4, 16, 128, 96,
             param_dtype=jnp.bfloat16, force_tiled=True, atol=4e-2, rtol=4e-2)
    # 3) Tiled path with K not a multiple of 128 (in-kernel K mask), horizon<128
    #    (lane padding) and M split into 2 tiles for the parallel axis.
    run_case(2, 2, 8, 6, 112, 60,
             param_dtype=jnp.bfloat16, force_tiled=True, atol=4e-2, rtol=4e-2)
    # 4) Tiled path with nk > 1 (multi-step accumulation) + K remainder mask.
    run_case(3, 2, 8, 10, 250, 96,
             param_dtype=jnp.bfloat16, force_tiled=True, atol=4e-2, rtol=4e-2)

    print("KERNEL_OK")
</pallas_src>

<mosaic_0001>
module attributes {stable_mosaic.version = 11 : i64} {
  func.func @_linear_kernel_small(%arg0: memref<8x256xf32, #tpu.memory_space<vmem>>, %arg1: memref<256x128xf32, #tpu.memory_space<vmem>>, %arg2: memref<1x128xf32, #tpu.memory_space<vmem>>, %arg3: memref<8x128xf32, #tpu.memory_space<vmem>>) attributes {dimension_semantics = [], scalar_prefetch = 0 : i64, scratch_operands = 0 : i64, tpu.core_type = #tpu.core_type<tc>} {
    %c0 = arith.constant 0 : index
    %c0_0 = arith.constant 0 : index
    %0 = vector.load %arg0[%c0, %c0_0] : memref<8x256xf32, #tpu.memory_space<vmem>>, vector<8x256xf32>
    %c0_1 = arith.constant 0 : index
    %c0_2 = arith.constant 0 : index
    %1 = vector.load %arg1[%c0_1, %c0_2] : memref<256x128xf32, #tpu.memory_space<vmem>>, vector<256x128xf32>
    %cst = arith.constant dense<0.000000e+00> : vector<8x128xf32>
    %2 = tpu.matmul %0, %1, %cst {dimension_numbers = #tpu.dot_dimension_numbers<[1], [0], [0], [1], [0, 0, 1, 1], [], []>} : vector<8x256xf32>, vector<256x128xf32>, vector<8x128xf32> -> vector<8x128xf32>
    %c0_3 = arith.constant 0 : index
    %c0_4 = arith.constant 0 : index
    %3 = vector.load %arg2[%c0_3, %c0_4] : memref<1x128xf32, #tpu.memory_space<vmem>>, vector<1x128xf32>
    %4 = vector.broadcast %3 : vector<1x128xf32> to vector<8x128xf32>
    %5 = arith.addf %2, %4 : vector<8x128xf32>
    %c0_5 = arith.constant 0 : index
    %c0_6 = arith.constant 0 : index
    %6 = vector.load %arg3[%c0_5, %c0_6] : memref<8x128xf32, #tpu.memory_space<vmem>>, vector<8x128xf32>
    tpu.vector_store %arg3[%c0_5, %c0_6], %5 {strides = array<i32>} : memref<8x128xf32, #tpu.memory_space<vmem>>, vector<8x128xf32>,
    return
  }
}

</mosaic_0001>

<llo_original>
// kernel: tpu_custom_call.1
$region0: #{tpu_custom_call.1}
  #allocation0 [shape = 'u32[]', space=smem, size = 0x4, offset = 0x4, fixed_abs, tag = 'smem constant byte address 0x4 - core index']
  #allocation1 [shape = 'u32[144,128]{1,0:T(1,128)}', space=vmem, size = 0x12000, scoped, tag = 'internal scratch']
  %s0 = inlined_call_operand.hbm [shape: f32[8,256], index: 0, kind: input, shape index: {}]
  %s1 = inlined_call_operand.hbm [shape: f32[256,128], index: 1, kind: input, shape index: {}]
  %s2 = inlined_call_operand.vmem [shape: f32[1,128], index: 2, kind: input, shape index: {}]
  %s3 = inlined_call_operand.hbm [shape: f32[8,128], index: 3, kind: output, shape index: {}]
  %s4 = sld [smem:[#allocation0]]
  $region30: #{tpu_custom_call.1} parent=0
    _
  %s6 = ssub.s32 1, %s4
  %s7 = scalar_select 0, %s6, %s4
  $region1: #{tpu_custom_call.1} parent=0
    #allocation2 [shape = 'u8[8192]{0}', space=vmem, size = 0x2000, scoped, tag = 'input window, operand 0, single buffered']
    #allocation3 [shape = 's32[1]{0}', space=sflag, size = 0x4, scoped, tag = 'scoped memory for tpu_custom_call.1']
    #allocation4 [shape = 's32[1]{0}', space=sflag, size = 0x4, scoped, tag = 'scoped memory for tpu_custom_call.1']
    #allocation5 [shape = 'u8[131072]{0}', space=vmem, size = 0x20000, scoped, tag = 'input window, operand 1, single buffered']
    #allocation6 [shape = 's32[1]{0}', space=sflag, size = 0x4, scoped, tag = 'scoped memory for tpu_custom_call.1']
    #allocation7 [shape = 'u8[4096]{0}', space=vmem, size = 0x1000, scoped, tag = 'output window, operand 0, single buffered']
    %8 = vsyncpa [#allocation3], 0
    %9 = vsyncpa [#allocation6], 0
    %10 = vsyncpa [#allocation4], 0
    // Predicated region
    $region2: #{tpu_custom_call.1} parent=1 // pred_check
      _
    $region3: #{tpu_custom_call.1} parent=1 // pred_check_branch
      %12 = sbr.rel (0) target = $region5
    $region4: #{tpu_custom_call.1} parent=1 // pred_region
      %s14 = ssub.s32 256, 256
      %15 = vsyncadd [#allocation3], %s14
      %s17 = sshll.u32 [#allocation2], 4
      %s18 = int_to_ptr.vmem [resolvable:$true] %s17
      %20 = dma.hbm_to_vmem [thread:$0]  %s0, 256, %s18, [#allocation3]
    $region5: #{tpu_custom_call.1} parent=1 // pred_fallthru
      _
    // Predicated region
    $region6: #{tpu_custom_call.1} parent=1 // pred_check
      _
    $region7: #{tpu_custom_call.1} parent=1 // pred_check_branch
      %22 = sbr.rel (0) target = $region9
    $region8: #{tpu_custom_call.1} parent=1 // pred_region
      %s24 = ssub.s32 4096, 4096
      %25 = vsyncadd [#allocation6], %s24
      %s26 = sshll.u32 [#allocation5], 4
      %s27 = int_to_ptr.vmem [resolvable:$true] %s26
      %32 = dma.hbm_to_vmem [thread:$0]  %s1, 4096, %s27, [#allocation6], 128, 128, 8
    $region9: #{tpu_custom_call.1} parent=1 // pred_fallthru
      _
    // Predicated region
    $region10: #{tpu_custom_call.1} parent=1 // pred_check
      _
    $region11: #{tpu_custom_call.1} parent=1 // pred_check_branch
      %34 = sbr.rel (0) target = $region13
    $region12: #{tpu_custom_call.1} parent=1 // pred_region
      _
    $region13: #{tpu_custom_call.1} parent=1 // pred_fallthru
      _
    // Predicated region
    $region14: #{tpu_custom_call.1} parent=1 // pred_check
      _
    $region15: #{tpu_custom_call.1} parent=1 // pred_check_branch
      %36 = sbr.rel (0) target = $region17
    $region16: #{tpu_custom_call.1} parent=1 // pred_region
      %37 = dma.done [#allocation3], 256
    $region17: #{tpu_custom_call.1} parent=1 // pred_fallthru
      _
    // Predicated region
    $region18: #{tpu_custom_call.1} parent=1 // pred_check
      _
    $region19: #{tpu_custom_call.1} parent=1 // pred_check_branch
      %39 = sbr.rel (0) target = $region21
    $region20: #{tpu_custom_call.1} parent=1 // pred_region
      %40 = dma.done [#allocation6], 4096
    $region21: #{tpu_custom_call.1} parent=1 // pred_fallthru
      _
    %v41 = vld [vmem:[#allocation2] sm:$0xff]
    %v42 = vld [vmem:[#allocation2 + $0x8] sm:$0xff]
    %v43 = vld [vmem:[#allocation5] sm:$0xff]
    %v44 = vld [vmem:[#allocation5 + $0x8] sm:$0xff]
    %v45 = vld [vmem:[#allocation5 + $0x10] sm:$0xff]
    %v46 = vld [vmem:[#allocation5 + $0x18] sm:$0xff]
    %v47 = vld [vmem:[#allocation5 + $0x20] sm:$0xff]
    %v48 = vld [vmem:[#allocation5 + $0x28] sm:$0xff]
    %v49 = vld [vmem:[#allocation5 + $0x30] sm:$0xff]
    %v50 = vld [vmem:[#allocation5 + $0x38] sm:$0xff]
    %v51 = vld [vmem:[#allocation5 + $0x40] sm:$0xff]
    %v52 = vld [vmem:[#allocation5 + $0x48] sm:$0xff]
    %v53 = vld [vmem:[#allocation5 + $0x50] sm:$0xff]
    %v54 = vld [vmem:[#allocation5 + $0x58] sm:$0xff]
    %v55 = vld [vmem:[#allocation5 + $0x60] sm:$0xff]
    %v56 = vld [vmem:[#allocation5 + $0x68] sm:$0xff]
    %v57 = vld [vmem:[#allocation5 + $0x70] sm:$0xff]
    %v58 = vld [vmem:[#allocation5 + $0x78] sm:$0xff]
    %v59 = vld [vmem:[#allocation5 + $0x80] sm:$0xff]
    %v60 = vld [vmem:[#allocation5 + $0x88] sm:$0xff]
    %v61 = vld [vmem:[#allocation5 + $0x90] sm:$0xff]
    %v62 = vld [vmem:[#allocation5 + $0x98] sm:$0xff]
    %v63 = vld [vmem:[#allocation5 + $0xa0] sm:$0xff]
    %v64 = vld [vmem:[#allocation5 + $0xa8] sm:$0xff]
    %v65 = vld [vmem:[#allocation5 + $0xb0] sm:$0xff]
    %v66 = vld [vmem:[#allocation5 + $0xb8] sm:$0xff]
    %v67 = vld [vmem:[#allocation5 + $0xc0] sm:$0xff]
    %v68 = vld [vmem:[#allocation5 + $0xc8] sm:$0xff]
    %v69 = vld [vmem:[#allocation5 + $0xd0] sm:$0xff]
    %v70 = vld [vmem:[#allocation5 + $0xd8] sm:$0xff]
    %v71 = vld [vmem:[#allocation5 + $0xe0] sm:$0xff]
    %v72 = vld [vmem:[#allocation5 + $0xe8] sm:$0xff]
    %v73 = vld [vmem:[#allocation5 + $0xf0] sm:$0xff]
    %v74 = vld [vmem:[#allocation5 + $0xf8] sm:$0xff]
    %v75 = vld [vmem:[%s2] sm:$0x1]
    %v77 = vlaneseq
    %v78 = vshrl.u32 %v77, 7
    %v79 = vsub.s32 0, %v78
    %v80 = vrot.slane %v75, %v79
    %82 = vmatprep.subr.mxu0 0.0
    %83 = vmatpush1.msra.mxu0 %v43
    %84 = vmatprep.subr.mxu0 0.0
    %85 = vmatpush1.msra.mxu0 %v44
    %86 = vmatprep.subr.mxu0 0.0
    %87 = vmatpush1.msra.mxu0 %v45
    %88 = vmatprep.subr.mxu0 0.0
    %89 = vmatpush1.msra.mxu0 %v46
    %90 = vmatprep.subr.mxu0 0.0
    %91 = vmatpush1.msra.mxu0 %v47
    %92 = vmatprep.subr.mxu0 0.0
    %93 = vmatpush1.msra.mxu0 %v48
    %94 = vmatprep.subr.mxu0 0.0
    %95 = vmatpush1.msra.mxu0 %v49
    %96 = vmatprep.subr.mxu0 0.0
    %97 = vmatpush1.msra.mxu0 %v50
    %98 = vmatprep.subr.mxu0 0.0
    %99 = vmatpush1.msra.mxu0 %v51
    %100 = vmatprep.subr.mxu0 0.0
    %101 = vmatpush1.msra.mxu0 %v52
    %102 = vmatprep.subr.mxu0 0.0
    %103 = vmatpush1.msra.mxu0 %v53
    %104 = vmatprep.subr.mxu0 0.0
    %105 = vmatpush1.msra.mxu0 %v54
    %106 = vmatprep.subr.mxu0 0.0
    %107 = vmatpush1.msra.mxu0 %v55
    %108 = vmatprep.subr.mxu0 0.0
    %109 = vmatpush1.msra.mxu0 %v56
    %110 = vmatprep.subr.mxu0 0.0
    %111 = vmatpush1.msra.mxu0 %v57
    %112 = vmatprep.subr.mxu0 0.0
    %113 = vmatpush1.msra.mxu0 %v58
    %114 = vmatprep.subr.mxu0 0.0
    %115 = vmatpush1.msra.mxu0 %v59
    %116 = vmatprep.subr.mxu0 0.0
    %117 = vmatpush1.msra.mxu0 %v60
    %118 = vmatprep.subr.mxu0 0.0
    %119 = vmatpush1.msra.mxu0 %v61
    %120 = vmatprep.subr.mxu0 0.0
    %121 = vmatpush1.msra.mxu0 %v62
    %122 = vmatprep.subr.mxu0 0.0
    %123 = vmatpush1.msra.mxu0 %v63
    %124 = vmatprep.subr.mxu0 0.0
    %125 = vmatpush1.msra.mxu0 %v64
    %126 = vmatprep.subr.mxu0 0.0
    %127 = vmatpush1.msra.mxu0 %v65
    %128 = vmatprep.subr.mxu0 0.0
    %129 = vmatpush1.msra.mxu0 %v66
    %130 = vmatprep.subr.mxu0 0.0
    %131 = vmatpush1.msra.mxu0 %v67
    %132 = vmatprep.subr.mxu0 0.0
    %133 = vmatpush1.msra.mxu0 %v68
    %134 = vmatprep.subr.mxu0 0.0
    %135 = vmatpush1.msra.mxu0 %v69
    %136 = vmatprep.subr.mxu0 0.0
    %137 = vmatpush1.msra.mxu0 %v70
    %138 = vmatprep.subr.mxu0 0.0
    %139 = vmatpush1.msra.mxu0 %v71
    %140 = vmatprep.subr.mxu0 0.0
    %141 = vmatpush1.msra.mxu0 %v72
    %142 = vmatprep.subr.mxu0 0.0
    %143 = vmatpush1.msra.mxu0 %v73
    %144 = vmatprep.subr.mxu0 0.0
    %145 = vmatpush1.msra.mxu0 %v74
    %146 = vmatprep.mubr.f32.mxu0 %v42
    %147 = vmatmul.mubr.f32.gmra.mrb[0].mxu0 %v41
    %v148 = vpop.f32.mrb[0].mxu0
    %v149 = vadd.f32 %v80, %v148
    %v150 = vpop.f32.mrb[0].mxu0
    %151 = vdwg.mxu0
    %152 = vst [vmem:[#allocation7] sm:$0xff] %v149
    // Predicated region
    $region22: #{tpu_custom_call.1} parent=1 // pred_check
      _
    $region23: #{tpu_custom_call.1} parent=1 // pred_check_branch
      %154 = sbr.rel (0) target = $region25
    $region24: #{tpu_custom_call.1} parent=1 // pred_region
      %s156 = ssub.s32 128, 128
      %157 = vsyncadd [#allocation4], %s156
      %s159 = sshll.u32 [#allocation7], 4
      %s160 = int_to_ptr.vmem [resolvable:$true] %s159
      %162 = dma.vmem_to_hbm [thread:$0]  %s160, 128, %s3, [#allocation4]
    $region25: #{tpu_custom_call.1} parent=1 // pred_fallthru
      _
    // Predicated region
    $region26: #{tpu_custom_call.1} parent=1 // pred_check
      _
    $region27: #{tpu_custom_call.1} parent=1 // pred_check_branch
      %164 = sbr.rel (0) target = $region29
    $region28: #{tpu_custom_call.1} parent=1 // pred_region
      %165 = dma.done [#allocation4], 128
    $region29: #{tpu_custom_call.1} parent=1 // pred_fallthru
      _
    %166 = vsyncpa [#allocation3], 1
    %167 = vsyncpa [#allocation6], 1
    %168 = vsyncpa [#allocation4], 1

</llo_original>
